<compile_context>
chip_gen: v7x
topology: tpu7x:2x2x1
jax: 0.10.0
libtpu: 0.0.40
codegen_flags: <defaults>
</compile_context>

<pallas_src>
import functools
import math

import jax
import jax.numpy as jnp
from jax.experimental import pallas as pl
from jax.experimental.pallas import tpu as pltpu


_LANE = 512                       # preferred lane-dense column width
_TILE_BYTES = 2 * 1024 * 1024     # ~2 MiB per-input per-tile target
_MAX_COL_BYTES = 4 * 1024 * 1024  # max bytes for one row before pad fallback
_VMEM_LIMIT = 32 * 1024 * 1024    # safe on v5e/v6e/v7x


# ---------------------------------------------------------------------------
# Kernels
# ---------------------------------------------------------------------------
def _poisson_none_kernel(pred_ref, tgt_ref, out_ref, *, eps):
    """Elementwise Poisson regression loss, no reduction (one row-tile)."""
    pred = pred_ref[...].astype(jnp.float32)
    tgt = tgt_ref[...].astype(jnp.float32)
    out_ref[...] = (pred - tgt * jnp.log(pred + eps)).astype(out_ref.dtype)


def _poisson_partial_kernel(pred_ref, tgt_ref, part_ref, *, eps, tm,
                            total_rows, need_mask):
    """Per-tile partial sum: sublane-reduce to a (1, cols) block.

    No cross-tile state -> the grid axis can be 'parallel' (v7x megacore).
    Partial last row-blocks are masked with a row iota against the true row
    count (OOB rows of the VMEM buffer hold garbage / stale data).
    """
    pred = pred_ref[...].astype(jnp.float32)
    tgt = tgt_ref[...].astype(jnp.float32)
    loss = pred - tgt * jnp.log(pred + eps)
    if need_mask:
        row0 = pl.program_id(0) * tm
        rid = jax.lax.broadcasted_iota(jnp.int32, loss.shape, 0)
        loss = jnp.where(row0 + rid < total_rows, loss, jnp.float32(0.0))
    part_ref[...] = jnp.sum(loss, axis=0, keepdims=True)


# ---------------------------------------------------------------------------
# Wrapper
# ---------------------------------------------------------------------------
def _plan_layout(shape, n, itemsize):
    """Pick a 2-D (rows, cols) presentation.  Returns (rows, cols, needs_pad)."""
    if n % 128 == 0:
        for cols in (512, 256, 128):          # largest lane-dense divisor
            if n % cols == 0:
                return n // cols, cols, False
    if len(shape) >= 1:
        last = int(shape[-1])
        if last >= 128 and last * itemsize <= _MAX_COL_BYTES:
            return n // last, last, False      # free collapse of leading dims
    cols = _LANE                               # fallback: zero-padded slab
    rows = pl.cdiv(n, cols)
    return rows, cols, True


def poisson_regression_loss(prediction, target, reduction: str = "mean",
                            eps: float = 1e-8, max_tile_rows: int = 1024):
    if reduction not in ("mean", "sum", "none"):
        raise ValueError(f"Incorrect reduction: {reduction}")
    if prediction.shape != target.shape:
        raise ValueError("prediction and target must have the same shape")

    orig_shape = prediction.shape
    out_dtype = jnp.result_type(prediction.dtype, target.dtype)
    n = int(math.prod(orig_shape)) if len(orig_shape) else 1

    if n == 0:  # empty tensor: match PyTorch (mean of empty is NaN, sum is 0)
        if reduction == "none":
            return jnp.zeros(orig_shape, dtype=out_dtype)
        if reduction == "sum":
            return jnp.zeros((), dtype=out_dtype)
        return jnp.full((), jnp.nan, dtype=out_dtype)

    itemsize = max(jnp.dtype(prediction.dtype).itemsize,
                   jnp.dtype(target.dtype).itemsize)
    rows, cols, needs_pad = _plan_layout(orig_shape, n, itemsize)

    def to_2d(x):
        if not needs_pad:
            return x.reshape(rows, cols)       # free: no data movement
        flat = x.reshape(-1)
        n_pad = rows * cols
        if n_pad > n:
            flat = jnp.pad(flat, (0, n_pad - n))   # fallback copy (rare)
        return flat.reshape(rows, cols)

    pred2d = to_2d(prediction)
    tgt2d = to_2d(target)

    # Row-tile size: ~_TILE_BYTES per input tile, double-buffered by Pallas.
    tm = max(1, min(max_tile_rows, rows, _TILE_BYTES // (cols * itemsize)))
    num_tiles = int(pl.cdiv(rows, tm))
    need_mask = (rows % tm) != 0

    in_specs = [
        pl.BlockSpec((tm, cols), lambda i: (i, 0)),
        pl.BlockSpec((tm, cols), lambda i: (i, 0)),
    ]
    cparams = pltpu.CompilerParams(
        dimension_semantics=("parallel",),
        vmem_limit_bytes=_VMEM_LIMIT,
    )

    if reduction == "none":
        out = pl.pallas_call(
            functools.partial(_poisson_none_kernel, eps=eps),
            out_shape=jax.ShapeDtypeStruct((rows, cols), out_dtype),
            grid=(num_tiles,),
            in_specs=in_specs,
            out_specs=pl.BlockSpec((tm, cols), lambda i: (i, 0)),
            compiler_params=cparams,
        )(pred2d, tgt2d)
        if needs_pad:
            return out.reshape(-1)[:n].reshape(orig_shape)
        return out.reshape(orig_shape)

    # "mean" / "sum": per-tile partial sums (parallel-safe), finished outside.
    partials = pl.pallas_call(
        functools.partial(_poisson_partial_kernel, eps=eps, tm=tm,
                          total_rows=rows, need_mask=need_mask),
        out_shape=jax.ShapeDtypeStruct((num_tiles, cols), jnp.float32),
        grid=(num_tiles,),
        in_specs=in_specs,
        out_specs=pl.BlockSpec((1, cols), lambda i: (i, 0)),
        compiler_params=cparams,
    )(pred2d, tgt2d)

    total = jnp.sum(partials, dtype=jnp.float32)
    if reduction == "mean":
        total = total / jnp.float32(n)   # true element count, not padded
    return total.astype(out_dtype)


# Pure-JAX reference (matches the PyTorch functional semantics).
def _reference(prediction, target, reduction="mean", eps=1e-8):
    pred = prediction.astype(jnp.float32)
    tgt = target.astype(jnp.float32)
    loss = pred - tgt * jnp.log(pred + eps)
    if reduction == "mean":
        return jnp.mean(loss)
    if reduction == "sum":
        return jnp.sum(loss)
    return loss


# ---------------------------------------------------------------------------
# Main
# ---------------------------------------------------------------------------
if __name__ == "__main__":
    key = jax.random.PRNGKey(0)

    # (shape, max_tile_rows):
    #   (2, 4)          module doc example (padded fallback path)
    #   (2, 4, 16, 16)  512-aligned no-copy fast path
    #   (5, 300)        unaligned size, no-copy last-dim path
    #   (35, 128)       small tile override -> exercises partial-last-block
    #                   masking (reduce) and dropped OOB stores ('none')
    cases = [((2, 4), 1024), ((2, 4, 16, 16), 1024),
             ((5, 300), 1024), ((35, 128), 8)]

    ok = True
    for shape, tile_rows in cases:
        key, k1, k2 = jax.random.split(key, 3)
        # Positive "rate"-like predictions so log() is well defined.
        prediction = jnp.abs(jax.random.normal(k1, shape, dtype=jnp.float32)) + 0.1
        target = jnp.abs(jax.random.normal(k2, shape, dtype=jnp.float32))

        for reduction in ("mean", "sum", "none"):
            out = poisson_regression_loss(prediction, target,
                                          reduction=reduction,
                                          max_tile_rows=tile_rows)
            out = jax.block_until_ready(out)
            ref = _reference(prediction, target, reduction=reduction)
            if out.shape != ref.shape:
                ok = False
                continue
            if not bool(jnp.allclose(out, ref, rtol=1e-5, atol=1e-5)):
                ok = False

    if ok:
        print("KERNEL_OK")
    else:
        print("KERNEL_MISMATCH")
        raise SystemExit(1)
</pallas_src>

<mosaic_0001>
module attributes {stable_mosaic.version = 11 : i64} {
  func.func @_poisson_partial_kernel(%arg0: i32, %arg1: memref<1x512xf32, #tpu.memory_space<vmem>>, %arg2: memref<1x512xf32, #tpu.memory_space<vmem>>, %arg3: memref<1x512xf32, #tpu.memory_space<vmem>>) attributes {dimension_semantics = [#tpu.dimension_semantics<parallel>], iteration_bounds = array<i64: 1>, scalar_prefetch = 0 : i64, scratch_operands = 0 : i64, tpu.core_type = #tpu.core_type<tc>, window_params = [{transform_indices = @transform_0, window_bounds = array<i64: 1, 512>}, {transform_indices = @transform_1, window_bounds = array<i64: 1, 512>}, {transform_indices = @transform_2, window_bounds = array<i64: 1, 512>}]} {
    %c0 = arith.constant 0 : index
    %c0_0 = arith.constant 0 : index
    %0 = vector.load %arg1[%c0, %c0_0] : memref<1x512xf32, #tpu.memory_space<vmem>>, vector<1x512xf32>
    %c0_1 = arith.constant 0 : index
    %c0_2 = arith.constant 0 : index
    %1 = vector.load %arg2[%c0_1, %c0_2] : memref<1x512xf32, #tpu.memory_space<vmem>>, vector<1x512xf32>
    %cst = arith.constant 9.99999993E-9 : f32
    %2 = vector.broadcast %cst : f32 to vector<1x512xf32>
    %3 = arith.addf %0, %2 : vector<1x512xf32>
    %4 = math.log %3 : vector<1x512xf32>
    %5 = arith.mulf %1, %4 : vector<1x512xf32>
    %6 = arith.subf %0, %5 : vector<1x512xf32>
    %cst_3 = arith.constant dense<0.000000e+00> : vector<512xf32>
    %7 = vector.multi_reduction <add>, %6, %cst_3 [0] : vector<1x512xf32> to vector<512xf32>
    %8 = vector.shape_cast %7 : vector<512xf32> to vector<1x512xf32>
    %c0_4 = arith.constant 0 : index
    %c0_5 = arith.constant 0 : index
    %9 = vector.load %arg3[%c0_4, %c0_5] : memref<1x512xf32, #tpu.memory_space<vmem>>, vector<1x512xf32>
    tpu.vector_store %arg3[%c0_4, %c0_5], %8 {strides = array<i32>} : memref<1x512xf32, #tpu.memory_space<vmem>>, vector<1x512xf32>,
    return
  }
  func.func @transform_0(%arg0: i32) -> (i32, i32) {
    %c0_i32 = arith.constant 0 : i32
    %c0_i32_0 = arith.constant 0 : i32
    return %arg0, %c0_i32 : i32, i32
  }
  func.func @transform_1(%arg0: i32) -> (i32, i32) {
    %c0_i32 = arith.constant 0 : i32
    %c0_i32_0 = arith.constant 0 : i32
    return %arg0, %c0_i32 : i32, i32
  }
  func.func @transform_2(%arg0: i32) -> (i32, i32) {
    %c0_i32 = arith.constant 0 : i32
    %c0_i32_0 = arith.constant 0 : i32
    return %arg0, %c0_i32 : i32, i32
  }
}

</mosaic_0001>

<llo_original>
// kernel: tpu_custom_call.1
$region0: #{tpu_custom_call.1}
  #allocation0 [shape = 'u32[]', space=smem, size = 0x4, offset = 0x4, fixed_abs, tag = 'smem constant byte address 0x4 - core index']
  #allocation1 [shape = 'u32[144,128]{1,0:T(1,128)}', space=vmem, size = 0x12000, scoped, tag = 'internal scratch']
  %s0 = inlined_call_operand.hbm [shape: f32[1,512], index: 0, kind: input, shape index: {}]
  %s1 = inlined_call_operand.hbm [shape: f32[1,512], index: 1, kind: input, shape index: {}]
  %s2 = inlined_call_operand.hbm [shape: f32[1,512], index: 2, kind: output, shape index: {}]
  %s3 = sld [smem:[#allocation0]]
  $region26: #{tpu_custom_call.1} parent=0
    _
  %s5 = ssub.s32 1, %s3
  %s6 = scalar_select 0, %s5, %s3
  $region1: #{tpu_custom_call.1} parent=0
    #allocation2 [shape = 'u8[2048]{0}', space=vmem, size = 0x800, scoped, tag = 'input window, operand 0, single buffered']
    #allocation3 [shape = 's32[1]{0}', space=sflag, size = 0x4, scoped, tag = 'scoped memory for tpu_custom_call.1']
    #allocation4 [shape = 's32[1]{0}', space=sflag, size = 0x4, scoped, tag = 'scoped memory for tpu_custom_call.1']
    #allocation5 [shape = 'u8[2048]{0}', space=vmem, size = 0x800, scoped, tag = 'input window, operand 1, single buffered']
    #allocation6 [shape = 's32[1]{0}', space=sflag, size = 0x4, scoped, tag = 'scoped memory for tpu_custom_call.1']
    #allocation7 [shape = 'u8[2048]{0}', space=vmem, size = 0x800, scoped, tag = 'output window, operand 0, single buffered']
    %7 = vsyncpa [#allocation3], 0
    %8 = vsyncpa [#allocation6], 0
    %9 = vsyncpa [#allocation4], 0
    // Predicated region
    $region2: #{tpu_custom_call.1} parent=1 // pred_check
      _
    $region3: #{tpu_custom_call.1} parent=1 // pred_check_branch
      %11 = sbr.rel (0) target = $region5
    $region4: #{tpu_custom_call.1} parent=1 // pred_region
      %s13 = ssub.s32 64, 64
      %14 = vsyncadd [#allocation3], %s13
      %s16 = sshll.u32 [#allocation2], 4
      %s17 = int_to_ptr.vmem [resolvable:$true] %s16
      %19 = dma.hbm_to_vmem [thread:$0]  %s0, 64, %s17, [#allocation3]
    $region5: #{tpu_custom_call.1} parent=1 // pred_fallthru
      _
    // Predicated region
    $region6: #{tpu_custom_call.1} parent=1 // pred_check
      _
    $region7: #{tpu_custom_call.1} parent=1 // pred_check_branch
      %21 = sbr.rel (0) target = $region9
    $region8: #{tpu_custom_call.1} parent=1 // pred_region
      %s23 = ssub.s32 64, 64
      %24 = vsyncadd [#allocation6], %s23
      %s26 = sshll.u32 [#allocation5], 4
      %s27 = int_to_ptr.vmem [resolvable:$true] %s26
      %29 = dma.hbm_to_vmem [thread:$0]  %s1, 64, %s27, [#allocation6]
    $region9: #{tpu_custom_call.1} parent=1 // pred_fallthru
      _
    // Predicated region
    $region10: #{tpu_custom_call.1} parent=1 // pred_check
      _
    $region11: #{tpu_custom_call.1} parent=1 // pred_check_branch
      %31 = sbr.rel (0) target = $region13
    $region12: #{tpu_custom_call.1} parent=1 // pred_region
      %32 = dma.done [#allocation3], 64
    $region13: #{tpu_custom_call.1} parent=1 // pred_fallthru
      _
    // Predicated region
    $region14: #{tpu_custom_call.1} parent=1 // pred_check
      _
    $region15: #{tpu_custom_call.1} parent=1 // pred_check_branch
      %34 = sbr.rel (0) target = $region17
    $region16: #{tpu_custom_call.1} parent=1 // pred_region
      %35 = dma.done [#allocation6], 64
    $region17: #{tpu_custom_call.1} parent=1 // pred_fallthru
      _
    %v36 = vld [vmem:[#allocation2] sm:$0xf]
    %v37 = vld [vmem:[#allocation5] sm:$0xf]
    %v38 = vadd.f32 %v36, 1e-08
    %v39 = vlog2.pop %v38
    %v40 = vmul.f32 %v39, 0.6931472
    %v41 = vmul.f32 %v37, %v40
    %v42 = vsub.f32 %v36, %v41
    %v43 = vadd.f32 %v42, 0.0
    %v44 = vlaneseq
    %vm45 = vcmp.ge.s32.totalorder %v44, 0
    %vm46 = vcmp.lt.s32.totalorder %v44, 512
    %vm47 = vmand %vm45, %vm46
    %48 = vst.msk [vmem:[#allocation7] sm:$0xf] %vm47, %v43
    // Predicated region
    $region18: #{tpu_custom_call.1} parent=1 // pred_check
      _
    $region19: #{tpu_custom_call.1} parent=1 // pred_check_branch
      %50 = sbr.rel (0) target = $region21
    $region20: #{tpu_custom_call.1} parent=1 // pred_region
      %s52 = ssub.s32 64, 64
      %53 = vsyncadd [#allocation4], %s52
      %s55 = sshll.u32 [#allocation7], 4
      %s56 = int_to_ptr.vmem [resolvable:$true] %s55
      %58 = dma.vmem_to_hbm [thread:$0]  %s56, 64, %s2, [#allocation4]
    $region21: #{tpu_custom_call.1} parent=1 // pred_fallthru
      _
    // Predicated region
    $region22: #{tpu_custom_call.1} parent=1 // pred_check
      _
    $region23: #{tpu_custom_call.1} parent=1 // pred_check_branch
      %60 = sbr.rel (0) target = $region25
    $region24: #{tpu_custom_call.1} parent=1 // pred_region
      %61 = dma.done [#allocation4], 64
    $region25: #{tpu_custom_call.1} parent=1 // pred_fallthru
      _
    %62 = vsyncpa [#allocation3], 1
    %63 = vsyncpa [#allocation6], 1
    %64 = vsyncpa [#allocation4], 1

</llo_original>
